<compile_context>
chip_gen: v7x
topology: tpu7x:2x2x1
jax: 0.10.0
libtpu: 0.0.40
codegen_flags: <defaults>
</compile_context>

<pallas_src>
import jax
import jax.numpy as jnp
from jax.experimental import pallas as pl
from jax.experimental.pallas import tpu as pltpu

_LANES = 128
_SUBLANES = 8
_LOG2 = 0.6931471805599453


def _softplus(z):
    # numerically stable log(1 + exp(z))  (= SoftMarginLoss element term)
    return jnp.maximum(z, 0.0) + jnp.log1p(jnp.exp(-jnp.abs(z)))


def _round_up(x, m):
    return ((x + m - 1) // m) * m


def _prep(x, tile_rows):
    """Flatten, zero-pad to a multiple of tile_rows*128, reshape (rows, 128).

    Returns (padded_2d, n_real, n_pad, n_tiles).  Original dtype preserved
    (bf16 inputs keep halved HBM traffic); cast to f32 happens in-kernel.
    """
    flat = jnp.ravel(x)
    n = int(flat.shape[0])
    chunk = tile_rows * _LANES
    pad = (-n) % chunk
    if pad:
        flat = jnp.pad(flat, (0, pad))
    rows = (n + pad) // _LANES
    return flat.reshape(rows, _LANES), n, pad, rows // tile_rows


def _pick_tile_rows(n_elems, max_tile_rows):
    rows_needed = pl.cdiv(max(n_elems, 1), _LANES)
    return min(max_tile_rows, _round_up(rows_needed, _SUBLANES))


def _clamped_index_map(n_tiles):
    last = n_tiles - 1
    return lambda i: (jnp.minimum(i, last), 0)


def _tile_to_vreg_sum(tile, tile_rows):
    # (tile_rows, 128) -> (8, 128) partial sum using only VPU adds (no
    # per-tile XLU reduction; the XLU collapse happens once at finalize).
    return jnp.sum(
        tile.reshape(tile_rows // _SUBLANES, _SUBLANES, _LANES), axis=0)


def _make_kernel(*, beta, up, non,
                 rows_conf, rows_lab, rows_unl,
                 n_conf, n_lab, n_unl, pad_lab, pad_unl,
                 tiles_conf, tiles_lab, tiles_unl, num_tiles):
    # UP branch needs softplus(-unlabeled); the other branch softplus(+unlabeled).
    unl_sign = -1.0 if up else 1.0

    def kernel(conf_ref, lab_ref, unlab_ref, out_ref,
               acc_sp_lab, acc_lin_lab, acc_sp_unl, acc_conf):
        i = pl.program_id(0)

        @pl.when(i == 0)
        def _():
            acc_sp_lab[...] = jnp.zeros_like(acc_sp_lab)
            acc_lin_lab[...] = jnp.zeros_like(acc_lin_lab)
            acc_sp_unl[...] = jnp.zeros_like(acc_sp_unl)
            acc_conf[...] = jnp.zeros_like(acc_conf)

        @pl.when(i < tiles_lab)
        def _():
            lab = lab_ref[...].astype(jnp.float32)
            # Single softplus pass over `labeled`; this is the "+1 label" term.
            acc_sp_lab[...] += _tile_to_vreg_sum(_softplus(-lab), rows_lab)
            # Linear term yields the "-1 label" term via softplus(x)=softplus(-x)+x.
            acc_lin_lab[...] += _tile_to_vreg_sum(lab, rows_lab)

        @pl.when(i < tiles_unl)
        def _():
            unl = unlab_ref[...].astype(jnp.float32)
            acc_sp_unl[...] += _tile_to_vreg_sum(_softplus(unl_sign * unl),
                                                 rows_unl)

        @pl.when(i < tiles_conf)
        def _():
            acc_conf[...] += _tile_to_vreg_sum(
                conf_ref[...].astype(jnp.float32), rows_conf)

        @pl.when(i == num_tiles - 1)
        def _():
            # One XLU collapse per accumulator, amortized over the whole pass.
            # Padded zeros contribute softplus(0)=log(2) each -> static fix.
            sp_lab_sum = jnp.sum(acc_sp_lab[...]) - pad_lab * _LOG2
            lin_lab_sum = jnp.sum(acc_lin_lab[...])
            sp_unl_sum = jnp.sum(acc_sp_unl[...]) - pad_unl * _LOG2
            conf_sum = jnp.sum(acc_conf[...])

            # SoftMarginLoss(labeled, +1) and (labeled, -1), mean reduction.
            y_conf_pos = sp_lab_sum / n_lab
            y_conf_neg = y_conf_pos + lin_lab_sum / n_lab
            mean_conf = conf_sum / n_conf
            mean_sp_unl = sp_unl_sum / n_unl

            unlabeled_risk = beta * mean_sp_unl
            if up:
                # torch.mean((1 - conf) * scalar) == (1 - mean(conf)) * scalar
                neg_risk = (1.0 - mean_conf) * y_conf_neg
                pos_risk = (mean_conf - beta) * y_conf_pos + unlabeled_risk
            else:
                pos_risk = mean_conf * y_conf_pos
                neg_risk = (1.0 - beta - mean_conf) * y_conf_neg + unlabeled_risk

            if non:
                obj = jnp.maximum(neg_risk, 0.0) + jnp.maximum(pos_risk, 0.0)
            else:
                obj = neg_risk + pos_risk

            out_ref[0, 0] = obj

    return kernel


def make_cu_loss(beta: float, up: bool, non: bool, max_tile_rows: int = 1024):
    """Build the CU-loss callable with static hyperparameters baked in.

    `up` mirrors the PyTorch __init__ decision `conf.mean() > 0.5` (a
    device->host sync at construction time, same semantics as the module);
    `non` mirrors the `non` constructor flag.
    """

    def cu_loss(conf, labeled, unlabeled):
        # Per-array tile heights: small slabs are not padded up to the big
        # slab's tile, cutting pad HBM traffic and per-buffer VMEM.
        rows_conf = _pick_tile_rows(int(conf.size), max_tile_rows)
        rows_lab = _pick_tile_rows(int(labeled.size), max_tile_rows)
        rows_unl = _pick_tile_rows(int(unlabeled.size), max_tile_rows)

        conf2, n_conf, _, tiles_conf = _prep(conf, rows_conf)
        lab2, n_lab, pad_lab, tiles_lab = _prep(labeled, rows_lab)
        unl2, n_unl, pad_unl, tiles_unl = _prep(unlabeled, rows_unl)
        num_tiles = max(tiles_conf, tiles_lab, tiles_unl)

        kernel = _make_kernel(
            beta=float(beta), up=bool(up), non=bool(non),
            rows_conf=rows_conf, rows_lab=rows_lab, rows_unl=rows_unl,
            n_conf=n_conf, n_lab=n_lab, n_unl=n_unl,
            pad_lab=pad_lab, pad_unl=pad_unl,
            tiles_conf=tiles_conf, tiles_lab=tiles_lab, tiles_unl=tiles_unl,
            num_tiles=num_tiles)

        out = pl.pallas_call(
            kernel,
            out_shape=jax.ShapeDtypeStruct((1, 1), jnp.float32),
            grid_spec=pltpu.PrefetchScalarGridSpec(
                num_scalar_prefetch=0,
                grid=(num_tiles,),
                in_specs=[
                    pl.BlockSpec((rows_conf, _LANES),
                                 _clamped_index_map(tiles_conf)),
                    pl.BlockSpec((rows_lab, _LANES),
                                 _clamped_index_map(tiles_lab)),
                    pl.BlockSpec((rows_unl, _LANES),
                                 _clamped_index_map(tiles_unl)),
                ],
                out_specs=pl.BlockSpec((1, 1), lambda i: (0, 0),
                                       memory_space=pltpu.MemorySpace.SMEM),
                scratch_shapes=[pltpu.VMEM((_SUBLANES, _LANES), jnp.float32)] * 4,
            ),
            compiler_params=pltpu.CompilerParams(
                dimension_semantics=("arbitrary",),
                # Tiles + double-buffering + scratch stay well under v5e's
                # 16 MiB scoped default and v7x's 64 MiB physical VMEM.
                vmem_limit_bytes=32 * 1024 * 1024,
            ),
        )(conf2, lab2, unl2)
        return out[0, 0]

    return cu_loss


def cu_loss_ref(conf, labeled, unlabeled, beta, up, non):
    """Pure-JAX reference matching the PyTorch forward."""
    conf = conf.astype(jnp.float32)
    labeled = labeled.astype(jnp.float32)
    unlabeled = unlabeled.astype(jnp.float32)
    y_pos = jnp.mean(jax.nn.softplus(-labeled))
    y_neg = jnp.mean(jax.nn.softplus(labeled))
    if up:
        unl = beta * jnp.mean(jax.nn.softplus(-unlabeled))
        neg = jnp.mean(1.0 - conf) * y_neg
        pos = jnp.mean(conf - beta) * y_pos + unl
    else:
        unl = beta * jnp.mean(jax.nn.softplus(unlabeled))
        pos = jnp.mean(conf) * y_pos
        neg = jnp.mean(1.0 - beta - conf) * y_neg + unl
    if non:
        return jnp.maximum(neg, 0.0) + jnp.maximum(pos, 0.0)
    return neg + pos


if __name__ == "__main__":
    key = jax.random.PRNGKey(0)
    k0, k1, k2, k3 = jax.random.split(key, 4)

    # Small, lane-aligned score slabs (last dim = 128).
    conf_init = jax.random.uniform(k0, (8, 128), jnp.float32)  # __init__'s conf
    conf = jax.random.uniform(k1, (8, 128), jnp.float32)       # forward's conf
    labeled = jax.random.normal(k2, (8, 128), jnp.float32)
    unlabeled = jax.random.normal(k3, (16, 128), jnp.float32)

    beta = 0.5          # constructor hyperparameter (deterministic)
    non = False
    up = bool(jnp.mean(conf_init) > 0.5)  # mirrors `if conf.mean() > 0.5`

    cu_loss = make_cu_loss(beta, up, non)
    out = jax.block_until_ready(cu_loss(conf, labeled, unlabeled))

    ref = cu_loss_ref(conf, labeled, unlabeled, beta, up, non)
    assert jnp.allclose(out, ref, rtol=1e-4, atol=1e-4), (out, ref)
    print("KERNEL_OK")
</pallas_src>

<mosaic_0001>
module attributes {stable_mosaic.version = 11 : i64} {
  func.func @kernel(%arg0: i32, %arg1: memref<8x128xf32, #tpu.memory_space<vmem>>, %arg2: memref<8x128xf32, #tpu.memory_space<vmem>>, %arg3: memref<16x128xf32, #tpu.memory_space<vmem>>, %arg4: memref<1x1xf32, #tpu.memory_space<smem>>, %arg5: memref<8x128xf32, #tpu.memory_space<vmem>>, %arg6: memref<8x128xf32, #tpu.memory_space<vmem>>, %arg7: memref<8x128xf32, #tpu.memory_space<vmem>>, %arg8: memref<8x128xf32, #tpu.memory_space<vmem>>) attributes {dimension_semantics = [#tpu.dimension_semantics<arbitrary>], iteration_bounds = array<i64: 1>, scalar_prefetch = 0 : i64, scratch_operands = 4 : i64, tpu.core_type = #tpu.core_type<tc>, window_params = [{transform_indices = @transform_0, window_bounds = array<i64: 8, 128>}, {transform_indices = @transform_1, window_bounds = array<i64: 8, 128>}, {transform_indices = @transform_2, window_bounds = array<i64: 16, 128>}, {transform_indices = @transform_3, window_bounds = array<i64: 1, 1>}]} {
    %c0_i32 = arith.constant 0 : i32
    %0 = arith.cmpi eq, %arg0, %c0_i32 : i32
    %1 = arith.extui %0 : i1 to i32
    %c0_i32_0 = arith.constant 0 : i32
    %2 = arith.cmpi ne, %1, %c0_i32_0 : i32
    scf.if %2 {
      %cst = arith.constant 0.000000e+00 : f32
      %15 = vector.broadcast %cst : f32 to vector<8x128xf32>
      %c0 = arith.constant 0 : index
      %c0_8 = arith.constant 0 : index
      %16 = vector.load %arg5[%c0, %c0_8] : memref<8x128xf32, #tpu.memory_space<vmem>>, vector<8x128xf32>
      tpu.vector_store %arg5[%c0, %c0_8], %15 {strides = array<i32>} : memref<8x128xf32, #tpu.memory_space<vmem>>, vector<8x128xf32>,
      %cst_9 = arith.constant 0.000000e+00 : f32
      %17 = vector.broadcast %cst_9 : f32 to vector<8x128xf32>
      %c0_10 = arith.constant 0 : index
      %c0_11 = arith.constant 0 : index
      %18 = vector.load %arg6[%c0_10, %c0_11] : memref<8x128xf32, #tpu.memory_space<vmem>>, vector<8x128xf32>
      tpu.vector_store %arg6[%c0_10, %c0_11], %17 {strides = array<i32>} : memref<8x128xf32, #tpu.memory_space<vmem>>, vector<8x128xf32>,
      %cst_12 = arith.constant 0.000000e+00 : f32
      %19 = vector.broadcast %cst_12 : f32 to vector<8x128xf32>
      %c0_13 = arith.constant 0 : index
      %c0_14 = arith.constant 0 : index
      %20 = vector.load %arg7[%c0_13, %c0_14] : memref<8x128xf32, #tpu.memory_space<vmem>>, vector<8x128xf32>
      tpu.vector_store %arg7[%c0_13, %c0_14], %19 {strides = array<i32>} : memref<8x128xf32, #tpu.memory_space<vmem>>, vector<8x128xf32>,
      %cst_15 = arith.constant 0.000000e+00 : f32
      %21 = vector.broadcast %cst_15 : f32 to vector<8x128xf32>
      %c0_16 = arith.constant 0 : index
      %c0_17 = arith.constant 0 : index
      %22 = vector.load %arg8[%c0_16, %c0_17] : memref<8x128xf32, #tpu.memory_space<vmem>>, vector<8x128xf32>
      tpu.vector_store %arg8[%c0_16, %c0_17], %21 {strides = array<i32>} : memref<8x128xf32, #tpu.memory_space<vmem>>, vector<8x128xf32>,
    } else {
    }
    %c1_i32 = arith.constant 1 : i32
    %3 = arith.cmpi slt, %arg0, %c1_i32 : i32
    %4 = arith.extui %3 : i1 to i32
    %c0_i32_1 = arith.constant 0 : i32
    %5 = arith.cmpi ne, %4, %c0_i32_1 : i32
    scf.if %5 {
      %c0 = arith.constant 0 : index
      %c0_8 = arith.constant 0 : index
      %15 = vector.load %arg2[%c0, %c0_8] : memref<8x128xf32, #tpu.memory_space<vmem>>, vector<8x128xf32>
      %c0_9 = arith.constant 0 : index
      %c0_10 = arith.constant 0 : index
      %16 = vector.load %arg5[%c0_9, %c0_10] : memref<8x128xf32, #tpu.memory_space<vmem>>, vector<8x128xf32>
      %cst = arith.constant 0.000000e+00 : f32
      %17 = vector.broadcast %cst : f32 to vector<8x128xf32>
      %18 = arith.subf %17, %15 : vector<8x128xf32>
      %cst_11 = arith.constant 0.000000e+00 : f32
      %19 = vector.broadcast %cst_11 : f32 to vector<8x128xf32>
      %20 = arith.maximumf %18, %19 : vector<8x128xf32>
      %21 = math.absf %18 : vector<8x128xf32>
      %cst_12 = arith.constant 0.000000e+00 : f32
      %22 = vector.broadcast %cst_12 : f32 to vector<8x128xf32>
      %23 = arith.subf %22, %21 : vector<8x128xf32>
      %24 = math.exp %23 : vector<8x128xf32>
      %25 = math.log1p %24 : vector<8x128xf32>
      %26 = arith.addf %20, %25 : vector<8x128xf32>
      %27 = vector.shape_cast %26 : vector<8x128xf32> to vector<1x8x128xf32>
      %cst_13 = arith.constant dense<0.000000e+00> : vector<8x128xf32>
      %28 = vector.multi_reduction <add>, %27, %cst_13 [0] : vector<1x8x128xf32> to vector<8x128xf32>
      %29 = arith.addf %16, %28 : vector<8x128xf32>
      %c0_14 = arith.constant 0 : index
      %c0_15 = arith.constant 0 : index
      %30 = vector.load %arg5[%c0_14, %c0_15] : memref<8x128xf32, #tpu.memory_space<vmem>>, vector<8x128xf32>
      tpu.vector_store %arg5[%c0_14, %c0_15], %29 {strides = array<i32>} : memref<8x128xf32, #tpu.memory_space<vmem>>, vector<8x128xf32>,
      %c0_16 = arith.constant 0 : index
      %c0_17 = arith.constant 0 : index
      %31 = vector.load %arg6[%c0_16, %c0_17] : memref<8x128xf32, #tpu.memory_space<vmem>>, vector<8x128xf32>
      %32 = vector.shape_cast %15 : vector<8x128xf32> to vector<1x8x128xf32>
      %cst_18 = arith.constant dense<0.000000e+00> : vector<8x128xf32>
      %33 = vector.multi_reduction <add>, %32, %cst_18 [0] : vector<1x8x128xf32> to vector<8x128xf32>
      %34 = arith.addf %31, %33 : vector<8x128xf32>
      %c0_19 = arith.constant 0 : index
      %c0_20 = arith.constant 0 : index
      %35 = vector.load %arg6[%c0_19, %c0_20] : memref<8x128xf32, #tpu.memory_space<vmem>>, vector<8x128xf32>
      tpu.vector_store %arg6[%c0_19, %c0_20], %34 {strides = array<i32>} : memref<8x128xf32, #tpu.memory_space<vmem>>, vector<8x128xf32>,
    } else {
    }
    %c1_i32_2 = arith.constant 1 : i32
    %6 = arith.cmpi slt, %arg0, %c1_i32_2 : i32
    %7 = arith.extui %6 : i1 to i32
    %c0_i32_3 = arith.constant 0 : i32
    %8 = arith.cmpi ne, %7, %c0_i32_3 : i32
    scf.if %8 {
      %c0 = arith.constant 0 : index
      %c0_8 = arith.constant 0 : index
      %15 = vector.load %arg3[%c0, %c0_8] : memref<16x128xf32, #tpu.memory_space<vmem>>, vector<16x128xf32>
      %c0_9 = arith.constant 0 : index
      %c0_10 = arith.constant 0 : index
      %16 = vector.load %arg7[%c0_9, %c0_10] : memref<8x128xf32, #tpu.memory_space<vmem>>, vector<8x128xf32>
      %cst = arith.constant 1.000000e+00 : f32
      %17 = vector.broadcast %cst : f32 to vector<16x128xf32>
      %18 = arith.mulf %17, %15 : vector<16x128xf32>
      %cst_11 = arith.constant 0.000000e+00 : f32
      %19 = vector.broadcast %cst_11 : f32 to vector<16x128xf32>
      %20 = arith.maximumf %18, %19 : vector<16x128xf32>
      %21 = math.absf %18 : vector<16x128xf32>
      %cst_12 = arith.constant 0.000000e+00 : f32
      %22 = vector.broadcast %cst_12 : f32 to vector<16x128xf32>
      %23 = arith.subf %22, %21 : vector<16x128xf32>
      %24 = math.exp %23 : vector<16x128xf32>
      %25 = math.log1p %24 : vector<16x128xf32>
      %26 = arith.addf %20, %25 : vector<16x128xf32>
      %27 = vector.shape_cast %26 : vector<16x128xf32> to vector<2x8x128xf32>
      %cst_13 = arith.constant dense<0.000000e+00> : vector<8x128xf32>
      %28 = vector.multi_reduction <add>, %27, %cst_13 [0] : vector<2x8x128xf32> to vector<8x128xf32>
      %29 = arith.addf %16, %28 : vector<8x128xf32>
      %c0_14 = arith.constant 0 : index
      %c0_15 = arith.constant 0 : index
      %30 = vector.load %arg7[%c0_14, %c0_15] : memref<8x128xf32, #tpu.memory_space<vmem>>, vector<8x128xf32>
      tpu.vector_store %arg7[%c0_14, %c0_15], %29 {strides = array<i32>} : memref<8x128xf32, #tpu.memory_space<vmem>>, vector<8x128xf32>,
    } else {
    }
    %c1_i32_4 = arith.constant 1 : i32
    %9 = arith.cmpi slt, %arg0, %c1_i32_4 : i32
    %10 = arith.extui %9 : i1 to i32
    %c0_i32_5 = arith.constant 0 : i32
    %11 = arith.cmpi ne, %10, %c0_i32_5 : i32
    scf.if %11 {
      %c0 = arith.constant 0 : index
      %c0_8 = arith.constant 0 : index
      %15 = vector.load %arg8[%c0, %c0_8] : memref<8x128xf32, #tpu.memory_space<vmem>>, vector<8x128xf32>
      %c0_9 = arith.constant 0 : index
      %c0_10 = arith.constant 0 : index
      %16 = vector.load %arg1[%c0_9, %c0_10] : memref<8x128xf32, #tpu.memory_space<vmem>>, vector<8x128xf32>
      %17 = vector.shape_cast %16 : vector<8x128xf32> to vector<1x8x128xf32>
      %cst = arith.constant dense<0.000000e+00> : vector<8x128xf32>
      %18 = vector.multi_reduction <add>, %17, %cst [0] : vector<1x8x128xf32> to vector<8x128xf32>
      %19 = arith.addf %15, %18 : vector<8x128xf32>
      %c0_11 = arith.constant 0 : index
      %c0_12 = arith.constant 0 : index
      %20 = vector.load %arg8[%c0_11, %c0_12] : memref<8x128xf32, #tpu.memory_space<vmem>>, vector<8x128xf32>
      tpu.vector_store %arg8[%c0_11, %c0_12], %19 {strides = array<i32>} : memref<8x128xf32, #tpu.memory_space<vmem>>, vector<8x128xf32>,
    } else {
    }
    %c0_i32_6 = arith.constant 0 : i32
    %12 = arith.cmpi eq, %arg0, %c0_i32_6 : i32
    %13 = arith.extui %12 : i1 to i32
    %c0_i32_7 = arith.constant 0 : i32
    %14 = arith.cmpi ne, %13, %c0_i32_7 : i32
    scf.if %14 {
      %c0 = arith.constant 0 : index
      %c0_8 = arith.constant 0 : index
      %15 = vector.load %arg5[%c0, %c0_8] : memref<8x128xf32, #tpu.memory_space<vmem>>, vector<8x128xf32>
      %16 = vector.shape_cast %15 : vector<8x128xf32> to vector<1x8x128xf32>
      %cst = arith.constant dense<0.000000e+00> : vector<1xf32>
      %17 = vector.multi_reduction <add>, %16, %cst [1, 2] : vector<1x8x128xf32> to vector<1xf32>
      %18 = vector.shape_cast %17 : vector<1xf32> to vector<1x1x1xf32>
      %19 = vector.extract %18[0, 0, 0] : f32 from vector<1x1x1xf32>
      %cst_9 = arith.constant 0.000000e+00 : f32
      %20 = arith.subf %19, %cst_9 : f32
      %c0_10 = arith.constant 0 : index
      %c0_11 = arith.constant 0 : index
      %21 = vector.load %arg6[%c0_10, %c0_11] : memref<8x128xf32, #tpu.memory_space<vmem>>, vector<8x128xf32>
      %22 = vector.shape_cast %21 : vector<8x128xf32> to vector<1x8x128xf32>
      %cst_12 = arith.constant dense<0.000000e+00> : vector<1xf32>
      %23 = vector.multi_reduction <add>, %22, %cst_12 [1, 2] : vector<1x8x128xf32> to vector<1xf32>
      %24 = vector.shape_cast %23 : vector<1xf32> to vector<1x1x1xf32>
      %25 = vector.extract %24[0, 0, 0] : f32 from vector<1x1x1xf32>
      %c0_13 = arith.constant 0 : index
      %c0_14 = arith.constant 0 : index
      %26 = vector.load %arg7[%c0_13, %c0_14] : memref<8x128xf32, #tpu.memory_space<vmem>>, vector<8x128xf32>
      %27 = vector.shape_cast %26 : vector<8x128xf32> to vector<1x8x128xf32>
      %cst_15 = arith.constant dense<0.000000e+00> : vector<1xf32>
      %28 = vector.multi_reduction <add>, %27, %cst_15 [1, 2] : vector<1x8x128xf32> to vector<1xf32>
      %29 = vector.shape_cast %28 : vector<1xf32> to vector<1x1x1xf32>
      %30 = vector.extract %29[0, 0, 0] : f32 from vector<1x1x1xf32>
      %cst_16 = arith.constant 0.000000e+00 : f32
      %31 = arith.subf %30, %cst_16 : f32
      %c0_17 = arith.constant 0 : index
      %c0_18 = arith.constant 0 : index
      %32 = vector.load %arg8[%c0_17, %c0_18] : memref<8x128xf32, #tpu.memory_space<vmem>>, vector<8x128xf32>
      %33 = vector.shape_cast %32 : vector<8x128xf32> to vector<1x8x128xf32>
      %cst_19 = arith.constant dense<0.000000e+00> : vector<1xf32>
      %34 = vector.multi_reduction <add>, %33, %cst_19 [1, 2] : vector<1x8x128xf32> to vector<1xf32>
      %35 = vector.shape_cast %34 : vector<1xf32> to vector<1x1x1xf32>
      %36 = vector.extract %35[0, 0, 0] : f32 from vector<1x1x1xf32>
      %cst_20 = arith.constant 1.024000e+03 : f32
      %37 = arith.divf %20, %cst_20 : f32
      %cst_21 = arith.constant 1.024000e+03 : f32
      %38 = arith.divf %25, %cst_21 : f32
      %39 = arith.addf %37, %38 : f32
      %cst_22 = arith.constant 1.024000e+03 : f32
      %40 = arith.divf %36, %cst_22 : f32
      %cst_23 = arith.constant 2.048000e+03 : f32
      %41 = arith.divf %31, %cst_23 : f32
      %cst_24 = arith.constant 5.000000e-01 : f32
      %42 = arith.mulf %cst_24, %41 : f32
      %43 = arith.mulf %40, %37 : f32
      %cst_25 = arith.constant 5.000000e-01 : f32
      %44 = arith.subf %cst_25, %40 : f32
      %45 = arith.mulf %44, %39 : f32
      %46 = arith.addf %45, %42 : f32
      %47 = arith.addf %46, %43 : f32
      %c0_26 = arith.constant 0 : index
      %c0_27 = arith.constant 0 : index
      %48 = memref.load %arg4[%c0_26, %c0_27] : memref<1x1xf32, #tpu.memory_space<smem>>
      memref.store %47, %arg4[%c0_26, %c0_27] : memref<1x1xf32, #tpu.memory_space<smem>>
    } else {
    }
    return
  }
  func.func @transform_0(%arg0: i32) -> (i32, i32) {
    %c0_i32 = arith.constant 0 : i32
    %0 = arith.minsi %arg0, %c0_i32 : i32
    %c0_i32_0 = arith.constant 0 : i32
    %c0_i32_1 = arith.constant 0 : i32
    return %0, %c0_i32_0 : i32, i32
  }
  func.func @transform_1(%arg0: i32) -> (i32, i32) {
    %c0_i32 = arith.constant 0 : i32
    %0 = arith.minsi %arg0, %c0_i32 : i32
    %c0_i32_0 = arith.constant 0 : i32
    %c0_i32_1 = arith.constant 0 : i32
    return %0, %c0_i32_0 : i32, i32
  }
  func.func @transform_2(%arg0: i32) -> (i32, i32) {
    %c0_i32 = arith.constant 0 : i32
    %0 = arith.minsi %arg0, %c0_i32 : i32
    %c0_i32_0 = arith.constant 0 : i32
    %c0_i32_1 = arith.constant 0 : i32
    return %0, %c0_i32_0 : i32, i32
  }
  func.func @transform_3(%arg0: i32) -> (i32, i32) {
    %c0_i32 = arith.constant 0 : i32
    %c0_i32_0 = arith.constant 0 : i32
    %c0_i32_1 = arith.constant 0 : i32
    return %c0_i32, %c0_i32_0 : i32, i32
  }
}

</mosaic_0001>

<llo_original>
// kernel: tpu_custom_call.1
$region0: #{tpu_custom_call.1}
  #allocation0 [shape = 'u32[]', space=smem, size = 0x4, offset = 0x4, fixed_abs, tag = 'smem constant byte address 0x4 - core index']
  #allocation1 [shape = 'u32[144,128]{1,0:T(1,128)}', space=vmem, size = 0x12000, scoped, tag = 'internal scratch']
  #allocation2 [shape = 'f32[8,128]{1,0:T(8,128)}', space=vmem, size = 0x1000, scoped, tag = 'scratch operand']
  #allocation3 [shape = 'f32[8,128]{1,0:T(8,128)}', space=vmem, size = 0x1000, scoped, tag = 'scratch operand']
  #allocation4 [shape = 'f32[8,128]{1,0:T(8,128)}', space=vmem, size = 0x1000, scoped, tag = 'scratch operand']
  #allocation5 [shape = 'f32[8,128]{1,0:T(8,128)}', space=vmem, size = 0x1000, scoped, tag = 'scratch operand']
  %s0 = inlined_call_operand.hbm [shape: f32[8,128], index: 0, kind: input, shape index: {}]
  %s1 = inlined_call_operand.hbm [shape: f32[8,128], index: 1, kind: input, shape index: {}]
  %s2 = inlined_call_operand.hbm [shape: f32[16,128], index: 2, kind: input, shape index: {}]
  %s3 = inlined_call_operand.hbm [shape: f32[1,1], index: 3, kind: output, shape index: {}]
  %s4 = sld [smem:[#allocation0]]
  $region46: #{tpu_custom_call.1} parent=0
    _
  %s6 = ssub.s32 1, %s4
  %s7 = scalar_select 0, %s6, %s4
  $region1: #{tpu_custom_call.1} parent=0
    #allocation6 [shape = 'u8[4096]{0}', space=vmem, size = 0x1000, scoped, tag = 'input window, operand 0, single buffered']
    #allocation7 [shape = 's32[1]{0}', space=sflag, size = 0x4, scoped, tag = 'scoped memory for tpu_custom_call.1']
    #allocation8 [shape = 's32[1]{0}', space=sflag, size = 0x4, scoped, tag = 'scoped memory for tpu_custom_call.1']
    #allocation9 [shape = 'u8[4096]{0}', space=vmem, size = 0x1000, scoped, tag = 'input window, operand 1, single buffered']
    #allocation10 [shape = 's32[1]{0}', space=sflag, size = 0x4, scoped, tag = 'scoped memory for tpu_custom_call.1']
    #allocation11 [shape = 'u8[8192]{0}', space=vmem, size = 0x2000, scoped, tag = 'input window, operand 2, single buffered']
    #allocation12 [shape = 'u8[512]{0}', space=smem, size = 0x200, scoped, tag = 'output window, operand 0, single buffered']
    %8 = vsyncpa [#allocation7], 0
    %9 = vsyncpa [#allocation10], 0
    %10 = vsyncpa [#allocation8], 0
    // Predicated region
    $region2: #{tpu_custom_call.1} parent=1 // pred_check
      _
    $region3: #{tpu_custom_call.1} parent=1 // pred_check_branch
      %12 = sbr.rel (0) target = $region5
    $region4: #{tpu_custom_call.1} parent=1 // pred_region
      %s14 = ssub.s32 128, 128
      %15 = vsyncadd [#allocation7], %s14
      %s17 = sshll.u32 [#allocation6], 4
      %s18 = int_to_ptr.vmem [resolvable:$true] %s17
      %20 = dma.hbm_to_vmem [thread:$0]  %s0, 128, %s18, [#allocation7]
    $region5: #{tpu_custom_call.1} parent=1 // pred_fallthru
      _
    // Predicated region
    $region6: #{tpu_custom_call.1} parent=1 // pred_check
      _
    $region7: #{tpu_custom_call.1} parent=1 // pred_check_branch
      %22 = sbr.rel (0) target = $region9
    $region8: #{tpu_custom_call.1} parent=1 // pred_region
      %s24 = ssub.s32 128, 128
      %25 = vsyncadd [#allocation10], %s24
      %s27 = sshll.u32 [#allocation9], 4
      %s28 = int_to_ptr.vmem [resolvable:$true] %s27
      %30 = dma.hbm_to_vmem [thread:$0]  %s1, 128, %s28, [#allocation10]
    $region9: #{tpu_custom_call.1} parent=1 // pred_fallthru
      _
    // Predicated region
    $region10: #{tpu_custom_call.1} parent=1 // pred_check
      _
    $region11: #{tpu_custom_call.1} parent=1 // pred_check_branch
      %32 = sbr.rel (0) target = $region13
    $region12: #{tpu_custom_call.1} parent=1 // pred_region
      %s34 = ssub.s32 256, 256
      %35 = vsyncadd [#allocation10], %s34
      %s36 = sshll.u32 [#allocation11], 4
      %s37 = int_to_ptr.vmem [resolvable:$true] %s36
      %42 = dma.hbm_to_vmem [thread:$0]  %s2, 256, %s37, [#allocation10], 128, 128, 8
    $region13: #{tpu_custom_call.1} parent=1 // pred_fallthru
      _
    // Predicated region
    $region14: #{tpu_custom_call.1} parent=1 // pred_check
      _
    $region15: #{tpu_custom_call.1} parent=1 // pred_check_branch
      %44 = sbr.rel (0) target = $region17
    $region16: #{tpu_custom_call.1} parent=1 // pred_region
      %45 = dma.done [#allocation7], 128
    $region17: #{tpu_custom_call.1} parent=1 // pred_fallthru
      _
    // Predicated region
    $region18: #{tpu_custom_call.1} parent=1 // pred_check
      _
    $region19: #{tpu_custom_call.1} parent=1 // pred_check_branch
      %47 = sbr.rel (0) target = $region21
    $region20: #{tpu_custom_call.1} parent=1 // pred_region
      %48 = dma.done [#allocation10], 128
    $region21: #{tpu_custom_call.1} parent=1 // pred_fallthru
      _
    // Predicated region
    $region22: #{tpu_custom_call.1} parent=1 // pred_check
      _
    $region23: #{tpu_custom_call.1} parent=1 // pred_check_branch
      %50 = sbr.rel (0) target = $region25
    $region24: #{tpu_custom_call.1} parent=1 // pred_region
      %51 = dma.done [#allocation10], 256
    $region25: #{tpu_custom_call.1} parent=1 // pred_fallthru
      _
    %p52 = scmp.eq.s32.totalorder 0, 0
    // Predicated region
    $region26: #{tpu_custom_call.1} parent=1 // pred_check
      %p53 = pneg %p52
    $region27: #{tpu_custom_call.1} parent=1 // pred_check_branch
      %55 = sbr.rel (%p53) target = $region29
    $region28: #{tpu_custom_call.1} parent=1 // pred_region
      %56 = vst [vmem:[#allocation2] sm:$0xff] 0.0
      %57 = vst [vmem:[#allocation3] sm:$0xff] 0.0
      %58 = vst [vmem:[#allocation4] sm:$0xff] 0.0
      %59 = vst [vmem:[#allocation5] sm:$0xff] 0.0
    $region29: #{tpu_custom_call.1} parent=1 // pred_fallthru
      _
    %p60 = scmp.lt.s32.totalorder 0, 1
    // Predicated region
    $region30: #{tpu_custom_call.1} parent=1 // pred_check
      %p61 = pneg %p60
    $region31: #{tpu_custom_call.1} parent=1 // pred_check_branch
      %63 = sbr.rel (%p61) target = $region33
    $region32: #{tpu_custom_call.1} parent=1 // pred_region
      %v64 = vld [vmem:[#allocation9] sm:$0xff]
      %v65 = vld [vmem:[#allocation2] sm:$0xff]
      %v66 = vsub.f32 0.0, %v64
      %v67 = vmax.f32 %v66, 0.0
      %v68 = vand.u32 2147483647, %v66
      %v69 = vsub.f32 0.0, %v68
      %v70 = vmul.f32 %v69, 1.442695
      %v71 = vpow.pop %v70
      %v72 = vadd.f32 %v71, 1.0
      %v73 = vlog2.pop %v72
      %v74 = vmul.f32 %v73, 0.6931472
      %v75 = vmul.f32 -0.5, %v71
      %v76 = vadd.f32 %v75, 1.0
      %v77 = vmul.f32 %v76, %v71
      %v78 = vand.u32 2147483647, %v71
      %vm79 = vcmp.lt.f32.partialorder %v78, 0.0004427343
      %v80 = vsel %vm79, %v77, %v74
      %v81 = vadd.f32 %v67, %v80
      %v82 = vadd.f32 %v81, 0.0
      %v83 = vadd.f32 %v65, %v82
      %84 = vst [vmem:[#allocation2] sm:$0xff] %v83
      %v85 = vld [vmem:[#allocation3] sm:$0xff]
      %v86 = vadd.f32 %v64, 0.0
      %v87 = vadd.f32 %v85, %v86
      %88 = vst [vmem:[#allocation3] sm:$0xff] %v87
      %v89 = vld [vmem:[#allocation11] sm:$0xff]
      %v90 = vld [vmem:[#allocation11 + $0x8] sm:$0xff]
      %v91 = vld [vmem:[#allocation4] sm:$0xff]
      %v92 = vmax.f32 %v89, 0.0
      %v93 = vmax.f32 %v90, 0.0
      %v94 = vand.u32 2147483647, %v89
      %v95 = vand.u32 2147483647, %v90
      %v96 = vsub.f32 0.0, %v94
      %v97 = vsub.f32 0.0, %v95
      %v98 = vmul.f32 %v96, 1.442695
      %v99 = vpow.pop %v98
      %v100 = vmul.f32 %v97, 1.442695
      %v101 = vpow.pop %v100
      %v102 = vadd.f32 %v99, 1.0
      %v103 = vlog2.pop %v102
      %v104 = vmul.f32 %v103, 0.6931472
      %v105 = vmul.f32 -0.5, %v99
      %v106 = vadd.f32 %v105, 1.0
      %v107 = vmul.f32 %v106, %v99
      %v108 = vand.u32 2147483647, %v99
      %vm109 = vcmp.lt.f32.partialorder %v108, 0.0004427343
      %v110 = vsel %vm109, %v107, %v104
      %v111 = vadd.f32 %v101, 1.0
      %v112 = vlog2.pop %v111
      %v113 = vmul.f32 %v112, 0.6931472
      %v114 = vmul.f32 -0.5, %v101
      %v115 = vadd.f32 %v114, 1.0
      %v116 = vmul.f32 %v115, %v101
      %v117 = vand.u32 2147483647, %v101
      %vm118 = vcmp.lt.f32.partialorder %v117, 0.0004427343
      %v119 = vsel %vm118, %v116, %v113
      %v120 = vadd.f32 %v92, %v110
      %v121 = vadd.f32 %v93, %v119
      %v122 = vadd.f32 %v120, %v121
      %v123 = vadd.f32 %v91, %v122
      %124 = vst [vmem:[#allocation4] sm:$0xff] %v123
      %v125 = vld [vmem:[#allocation5] sm:$0xff]
      %v126 = vld [vmem:[#allocation6] sm:$0xff]
      %v127 = vadd.f32 %v126, 0.0
      %v128 = vadd.f32 %v125, %v127
      %129 = vst [vmem:[#allocation5] sm:$0xff] %v128
    $region33: #{tpu_custom_call.1} parent=1 // pred_fallthru
      _
    // Predicated region
    $region34: #{tpu_custom_call.1} parent=1 // pred_check
      %p130 = pneg %p52
    $region35: #{tpu_custom_call.1} parent=1 // pred_check_branch
      %132 = sbr.rel (%p130) target = $region37
    $region36: #{tpu_custom_call.1} parent=1 // pred_region
      %v133 = vld [vmem:[#allocation2] sm:$0xff]
      %134 = vadd.xlane.f32.xlu0 %v133
      %v135 = vpop.xlane.xlu0 %134
      %v136 = vrot.slane %v135, 4
      %v137 = vadd.f32 %v135, %v136
      %v138 = vrot.slane %v137, 2
      %v139 = vadd.f32 %v137, %v138
      %v140 = vrot.slane %v139, 1
      %v141 = vadd.f32 %v139, %v140
      %s142 = vtos %v141
      %v143 = vld [vmem:[#allocation3] sm:$0xff]
      %144 = vadd.xlane.f32.xlu0 %v143
      %v145 = vpop.xlane.xlu0 %144
      %v146 = vrot.slane %v145, 4
      %v147 = vadd.f32 %v145, %v146
      %v148 = vrot.slane %v147, 2
      %v149 = vadd.f32 %v147, %v148
      %v150 = vrot.slane %v149, 1
      %v151 = vadd.f32 %v149, %v150
      %s152 = vtos %v151
      %v153 = vld [vmem:[#allocation4] sm:$0xff]
      %154 = vadd.xlane.f32.xlu0 %v153
      %v155 = vpop.xlane.xlu0 %154
      %v156 = vrot.slane %v155, 4
      %v157 = vadd.f32 %v155, %v156
      %v158 = vrot.slane %v157, 2
      %v159 = vadd.f32 %v157, %v158
      %v160 = vrot.slane %v159, 1
      %v161 = vadd.f32 %v159, %v160
      %s162 = vtos %v161
      %v163 = vld [vmem:[#allocation5] sm:$0xff]
      %164 = vadd.xlane.f32.xlu0 %v163
      %v165 = vpop.xlane.xlu0 %164
      %v166 = vrot.slane %v165, 4
      %v167 = vadd.f32 %v165, %v166
      %v168 = vrot.slane %v167, 2
      %v169 = vadd.f32 %v167, %v168
      %v170 = vrot.slane %v169, 1
      %v171 = vadd.f32 %v169, %v170
      %s172 = vtos %v171
      %v173 = vrcp.pop 1024.0
      %s174 = vtos %v173
      %s175 = smul.f32 %s142, %s174
      %v176 = vrcp.pop 1024.0
      %s177 = vtos %v176
      %s178 = smul.f32 %s152, %s177
      %s179 = sadd.f32 %s175, %s178
      %v180 = vrcp.pop 1024.0
      %s181 = vtos %v180
      %s182 = smul.f32 %s172, %s181
      %v183 = vrcp.pop 2048.0
      %s184 = vtos %v183
      %s185 = smul.f32 %s162, %s184
      %s186 = smul.f32 %s185, 0.5
      %s187 = smul.f32 %s182, %s175
      %s188 = ssub.f32 0.5, %s182
      %s189 = smul.f32 %s188, %s179
      %s190 = sadd.f32 %s189, %s186
      %s191 = sadd.f32 %s190, %s187
      %s192 = scalar_lea.smem [#allocation12], 0
      %193 = sst [smem:[%s192]] %s191
    $region37: #{tpu_custom_call.1} parent=1 // pred_fallthru
      _
    // Predicated region
    $region38: #{tpu_custom_call.1} parent=1 // pred_check
      _
    $region39: #{tpu_custom_call.1} parent=1 // pred_check_branch
      %195 = sbr.rel (0) target = $region41
    $region40: #{tpu_custom_call.1} parent=1 // pred_region
      %s197 = ssub.s32 16, 16
      %198 = vsyncadd [#allocation8], %s197
      %201 = dma.smem_to_hbm [#allocation12], 16, %s3, [#allocation8]
    $region41: #{tpu_custom_call.1} parent=1 // pred_fallthru
      _
    // Predicated region
    $region42: #{tpu_custom_call.1} parent=1 // pred_check
      _
    $region43: #{tpu_custom_call.1} parent=1 // pred_check_branch
      %203 = sbr.rel (0) target = $region45
    $region44: #{tpu_custom_call.1} parent=1 // pred_region
      %204 = dma.done [#allocation8], 16
    $region45: #{tpu_custom_call.1} parent=1 // pred_fallthru
      _
    %205 = sfence
    %206 = vsyncpa [#allocation7], 1
    %207 = vsyncpa [#allocation10], 1
    %208 = vsyncpa [#allocation8], 1

</llo_original>
